<compile_context>
chip_gen: v6e
topology: v6e:2x2x1
jax: 0.10.0
libtpu: 0.0.40
codegen_flags: <defaults>
</compile_context>

<pallas_src>
import functools

import jax
import jax.numpy as jnp
from jax.experimental import pallas as pl
from jax.experimental.pallas import tpu as pltpu


def _roundup(v, m):
    return ((v + m - 1) // m) * m


# --------------------------------------------------------------------------
# Kernel
# --------------------------------------------------------------------------
def _generator_kernel(p_ref, x_ref, adj_ref, out_ref, *, flat_proj):
    bt, n, _ = x_ref.shape

    # Packed parameters: one tiny constant VMEM tile, loaded once per step.
    p = p_ref[...]                              # (48, 8) f32
    w1, b1 = p[0:2, 0:5],   p[8:9, 0:5]         # gc1: 2 -> 5
    w2, b2 = p[16:21, 0:5], p[24:25, 0:5]       # gc2: 5 -> 5
    w3, b3 = p[32:37, 0:2], p[40:41, 0:2]       # gc4: 5 -> 2

    adj = adj_ref[...]                          # (bt, n, n), f32 or bf16

    def project(h, w):
        # (bt, n, f) @ (f, g) -> (bt, n, g), f32 accumulation.
        g = w.shape[-1]
        if flat_proj:
            # One flat 2-D matmul with M = bt*n (layout-free since n % 8 == 0).
            hw = jnp.dot(h.reshape(bt * n, h.shape[-1]), w,
                         preferred_element_type=jnp.float32)
            return hw.reshape(bt, n, g)
        # Fallback for n % 8 != 0: broadcast-weight batched matmul.
        wb = jnp.broadcast_to(w, (bt,) + w.shape)
        return jnp.einsum('bnf,bfg->bng', h, wb,
                          preferred_element_type=jnp.float32)

    def aggregate(hw, b):
        # adj @ hw + b on the MXU.  hw is cast to adj's dtype so a bf16 adj
        # stays bf16 into the MXU (f32 accumulation) and no f32 copy of the
        # adj tile is ever materialized in VMEM.
        o = jnp.einsum('bmn,bng->bmg', adj, hw.astype(adj.dtype),
                       preferred_element_type=jnp.float32)
        return o + b

    h = jnp.maximum(aggregate(project(x_ref[...].astype(jnp.float32), w1), b1), 0.0)
    h = jnp.maximum(aggregate(project(h, w2), b2), 0.0)
    out_ref[...] = aggregate(project(h, w3), b3).astype(out_ref.dtype)


# --------------------------------------------------------------------------
# Parameter packing (one constant input instead of six)
# --------------------------------------------------------------------------
def _pack_params(params):
    w1, b1, w2, b2, w3, b3 = params
    p = jnp.zeros((48, 8), jnp.float32)
    p = p.at[0:2, 0:5].set(w1)        # rows  0..1
    p = p.at[8, 0:5].set(b1)          # row   8
    p = p.at[16:21, 0:5].set(w2)      # rows 16..20
    p = p.at[24, 0:5].set(b2)         # row  24
    p = p.at[32:37, 0:2].set(w3)      # rows 32..36
    p = p.at[40, 0:2].set(b3)         # row  40
    return p


# --------------------------------------------------------------------------
# Wrapper
# --------------------------------------------------------------------------
def generator_ft(x, adj, params, *, block_b=None, vmem_limit_bytes=None):
    """x: (B, N, 2) f32, adj: (B, N, N) f32 or bf16 -> (B, N, 2) f32.

    adj should be produced in bf16 upstream when accuracy allows (the kernel is
    HBM-bound on adj); do NOT cast right before this call -- that re-streams
    adj through HBM and erases the bandwidth win.
    """
    B, N, Fin = x.shape
    assert Fin == 2 and adj.shape == (B, N, N)

    # ---- VMEM accounting with real padding: last dim -> 128 lanes, 2nd-last -> 8.
    adj_bytes = jnp.dtype(adj.dtype).itemsize
    n_sub = _roundup(N, 8)
    adj_elem = n_sub * _roundup(N, 128) * adj_bytes      # adj tile bytes / batch elem
    io_elem = n_sub * 128 * 4                            # x / out tile bytes / elem (f32)
    # double-buffered pallas I/O (x2) + headroom for in-kernel f32 activation temps
    per_elem = 2 * (adj_elem + 2 * io_elem) + 4 * io_elem

    try:
        info = pltpu.get_tpu_info()
        phys_vmem = int(getattr(info, "vmem_capacity_bytes", 64 << 20))
    except Exception:                                    # interpret mode / older jax
        phys_vmem = 64 << 20                             # v7x per-TC worst case
    if vmem_limit_bytes is None:
        # Raise the scoped limit well past the 16/32 MiB defaults, but stay
        # comfortably under physical VMEM (v5e/v6e: 128 MiB, v7x: 64 MiB).
        vmem_limit_bytes = min(phys_vmem * 3 // 4, 100 << 20)

    if block_b is None:
        budget = vmem_limit_bytes - (1 << 20)            # params + misc headroom
        block_b = max(1, budget // per_elem)
        # 64-MiB-VMEM chips (v7x) have two TensorCores: keep >= 2 grid steps so
        # the "parallel" batch axis can be sharded across them.
        if phys_vmem <= (64 << 20) and B >= 2:
            block_b = min(block_b, pl.cdiv(B, 2))
        block_b = min(block_b, B)
    block_b = int(block_b)

    nb = pl.cdiv(B, block_b)
    # No jnp.pad of adj: a non-divisible tail block is handled by Pallas itself
    # (OOB reads only feed padded batch rows, OOB output rows are masked), so
    # adj is streamed from HBM exactly once.

    packed = _pack_params(params)
    kernel = functools.partial(_generator_kernel, flat_proj=(N % 8 == 0))

    return pl.pallas_call(
        kernel,
        out_shape=jax.ShapeDtypeStruct((B, N, 2), jnp.float32),
        grid_spec=pltpu.PrefetchScalarGridSpec(
            num_scalar_prefetch=0,
            grid=(nb,),
            in_specs=[
                pl.BlockSpec((48, 8), lambda i: (0, 0)),               # packed params
                pl.BlockSpec((block_b, N, Fin), lambda i: (i, 0, 0)),  # x
                pl.BlockSpec((block_b, N, N), lambda i: (i, 0, 0)),    # adj
            ],
            out_specs=pl.BlockSpec((block_b, N, 2), lambda i: (i, 0, 0)),
        ),
        compiler_params=pltpu.CompilerParams(
            dimension_semantics=("parallel",),
            vmem_limit_bytes=int(vmem_limit_bytes)),
    )(packed, x, adj)


# --------------------------------------------------------------------------
# Deterministic init (Kipf GraphConvolution-style uniform init) and reference
# --------------------------------------------------------------------------
def init_params(key):
    ks = jax.random.split(key, 6)

    def unif(k, shape, fan_out):
        s = 1.0 / float(fan_out) ** 0.5
        return jax.random.uniform(k, shape, jnp.float32, -s, s)

    w1 = unif(ks[0], (2, 5), 5); b1 = unif(ks[1], (5,), 5)
    w2 = unif(ks[2], (5, 5), 5); b2 = unif(ks[3], (5,), 5)
    w3 = unif(ks[4], (5, 2), 2); b3 = unif(ks[5], (2,), 2)
    return (w1, b1, w2, b2, w3, b3)


def _reference(x, adj, params):
    """Plain-JAX reference of the PyTorch forward for verification."""
    w1, b1, w2, b2, w3, b3 = params
    adj = adj.astype(jnp.float32)
    h = jax.nn.relu(jnp.einsum('bij,bjk->bik', adj, x @ w1) + b1)
    h = jax.nn.relu(jnp.einsum('bij,bjk->bik', adj, h @ w2) + b2)
    return jnp.einsum('bij,bjk->bik', adj, h @ w3) + b3


def _make_graph(kx, ka, B, N, adj_dtype):
    x = jax.random.normal(kx, (B, N, 2), jnp.float32)
    a = jax.random.uniform(ka, (B, N, N), jnp.float32)
    adj = (a + jnp.swapaxes(a, 1, 2)) * 0.5
    adj = adj / jnp.sum(adj, axis=-1, keepdims=True)
    return x, adj.astype(adj_dtype)   # producer-side cast (bf16 recommended)


if __name__ == "__main__":
    key = jax.random.PRNGKey(0)
    kx, ka, kp, kx2, ka2 = jax.random.split(key, 5)
    params = init_params(kp)

    # Config 1: B=2, N=16, bf16 adj (the bandwidth-saving layout), auto block_b.
    B, N = 2, 16
    x, adj = _make_graph(kx, ka, B, N, jnp.bfloat16)
    out = jax.block_until_ready(generator_ft(x, adj, params))
    ref = _reference(x, adj, params)
    assert out.shape == (B, N, 2)
    assert jnp.allclose(out, ref, atol=3e-2, rtol=3e-2), (out, ref)

    # Config 2: B=5 with block_b=2 -> multi-step grid with a masked
    # (non-divisible) tail block, f32 adj path.
    B2 = 5
    x2, adj2 = _make_graph(kx2, ka2, B2, N, jnp.float32)
    out2 = jax.block_until_ready(generator_ft(x2, adj2, params, block_b=2))
    ref2 = _reference(x2, adj2, params)
    assert out2.shape == (B2, N, 2)
    assert jnp.allclose(out2, ref2, atol=1e-4, rtol=1e-4), (out2, ref2)

    print("KERNEL_OK")
</pallas_src>

<mosaic_0001>
module attributes {stable_mosaic.version = 11 : i64} {
  func.func @_generator_kernel(%arg0: i32, %arg1: memref<48x8xf32, #tpu.memory_space<vmem>>, %arg2: memref<1x16x2xf32, #tpu.memory_space<vmem>>, %arg3: memref<1x16x16xbf16, #tpu.memory_space<vmem>>, %arg4: memref<1x16x2xf32, #tpu.memory_space<vmem>>) attributes {dimension_semantics = [#tpu.dimension_semantics<parallel>], iteration_bounds = array<i64: 2>, scalar_prefetch = 0 : i64, scratch_operands = 0 : i64, tpu.core_type = #tpu.core_type<tc>, window_params = [{pipeline_mode = #tpu.pipeline_mode<synchronous>, transform_indices = @transform_0, window_bounds = array<i64: 48, 8>}, {transform_indices = @transform_1, window_bounds = array<i64: 1, 16, 2>}, {transform_indices = @transform_2, window_bounds = array<i64: 1, 16, 16>}, {transform_indices = @transform_3, window_bounds = array<i64: 1, 16, 2>}]} {
    %c0 = arith.constant 0 : index
    %c0_0 = arith.constant 0 : index
    %0 = vector.load %arg1[%c0, %c0_0] : memref<48x8xf32, #tpu.memory_space<vmem>>, vector<48x8xf32>
    %1 = vector.extract_strided_slice %0 {offsets = [0, 0], sizes = [2, 5], strides = [1, 1]} : vector<48x8xf32> to vector<2x5xf32>
    %2 = vector.extract_strided_slice %0 {offsets = [8, 0], sizes = [1, 5], strides = [1, 1]} : vector<48x8xf32> to vector<1x5xf32>
    %3 = vector.extract_strided_slice %0 {offsets = [16, 0], sizes = [5, 5], strides = [1, 1]} : vector<48x8xf32> to vector<5x5xf32>
    %4 = vector.extract_strided_slice %0 {offsets = [24, 0], sizes = [1, 5], strides = [1, 1]} : vector<48x8xf32> to vector<1x5xf32>
    %5 = vector.extract_strided_slice %0 {offsets = [32, 0], sizes = [5, 2], strides = [1, 1]} : vector<48x8xf32> to vector<5x2xf32>
    %6 = vector.extract_strided_slice %0 {offsets = [40, 0], sizes = [1, 2], strides = [1, 1]} : vector<48x8xf32> to vector<1x2xf32>
    %c0_1 = arith.constant 0 : index
    %c0_2 = arith.constant 0 : index
    %c0_3 = arith.constant 0 : index
    %7 = vector.load %arg3[%c0_1, %c0_2, %c0_3] : memref<1x16x16xbf16, #tpu.memory_space<vmem>>, vector<1x16x16xbf16>
    %c0_4 = arith.constant 0 : index
    %c0_5 = arith.constant 0 : index
    %c0_6 = arith.constant 0 : index
    %8 = vector.load %arg2[%c0_4, %c0_5, %c0_6] : memref<1x16x2xf32, #tpu.memory_space<vmem>>, vector<1x16x2xf32>
    %9 = vector.shape_cast %8 : vector<1x16x2xf32> to vector<16x2xf32>
    %cst = arith.constant dense<0.000000e+00> : vector<16x5xf32>
    %10 = tpu.matmul %9, %1, %cst {dimension_numbers = #tpu.dot_dimension_numbers<[1], [0], [0], [1], [0, 0, 1, 1], [], []>} : vector<16x2xf32>, vector<2x5xf32>, vector<16x5xf32> -> vector<16x5xf32>
    %11 = vector.shape_cast %10 : vector<16x5xf32> to vector<1x16x5xf32>
    %12 = arith.truncf %11 : vector<1x16x5xf32> to vector<1x16x5xbf16>
    "tpu.trace_start"() <{level = 10 : i32, message = "bmn,bng->bmg"}> : () -> ()
    %cst_7 = arith.constant dense<0.000000e+00> : vector<1x16x5xf32>
    %13 = tpu.matmul %7, %12, %cst_7 {dimension_numbers = #tpu.dot_dimension_numbers<[2], [1], [1], [2], [0, 0, 0, 1, 1, 2], [0], [0]>} : vector<1x16x16xbf16>, vector<1x16x5xbf16>, vector<1x16x5xf32> -> vector<1x16x5xf32>
    "tpu.trace_stop"() : () -> ()
    %14 = vector.shape_cast %2 : vector<1x5xf32> to vector<1x1x5xf32>
    %15 = vector.broadcast %14 : vector<1x1x5xf32> to vector<1x16x5xf32>
    %16 = arith.addf %13, %15 : vector<1x16x5xf32>
    %cst_8 = arith.constant 0.000000e+00 : f32
    %17 = vector.broadcast %cst_8 : f32 to vector<1x16x5xf32>
    %18 = arith.maximumf %16, %17 : vector<1x16x5xf32>
    %19 = vector.shape_cast %18 : vector<1x16x5xf32> to vector<16x5xf32>
    %cst_9 = arith.constant dense<0.000000e+00> : vector<16x5xf32>
    %20 = tpu.matmul %19, %3, %cst_9 {dimension_numbers = #tpu.dot_dimension_numbers<[1], [0], [0], [1], [0, 0, 1, 1], [], []>} : vector<16x5xf32>, vector<5x5xf32>, vector<16x5xf32> -> vector<16x5xf32>
    %21 = vector.shape_cast %20 : vector<16x5xf32> to vector<1x16x5xf32>
    %22 = arith.truncf %21 : vector<1x16x5xf32> to vector<1x16x5xbf16>
    "tpu.trace_start"() <{level = 10 : i32, message = "bmn,bng->bmg"}> : () -> ()
    %cst_10 = arith.constant dense<0.000000e+00> : vector<1x16x5xf32>
    %23 = tpu.matmul %7, %22, %cst_10 {dimension_numbers = #tpu.dot_dimension_numbers<[2], [1], [1], [2], [0, 0, 0, 1, 1, 2], [0], [0]>} : vector<1x16x16xbf16>, vector<1x16x5xbf16>, vector<1x16x5xf32> -> vector<1x16x5xf32>
    "tpu.trace_stop"() : () -> ()
    %24 = vector.shape_cast %4 : vector<1x5xf32> to vector<1x1x5xf32>
    %25 = vector.broadcast %24 : vector<1x1x5xf32> to vector<1x16x5xf32>
    %26 = arith.addf %23, %25 : vector<1x16x5xf32>
    %cst_11 = arith.constant 0.000000e+00 : f32
    %27 = vector.broadcast %cst_11 : f32 to vector<1x16x5xf32>
    %28 = arith.maximumf %26, %27 : vector<1x16x5xf32>
    %29 = vector.shape_cast %28 : vector<1x16x5xf32> to vector<16x5xf32>
    %cst_12 = arith.constant dense<0.000000e+00> : vector<16x2xf32>
    %30 = tpu.matmul %29, %5, %cst_12 {dimension_numbers = #tpu.dot_dimension_numbers<[1], [0], [0], [1], [0, 0, 1, 1], [], []>} : vector<16x5xf32>, vector<5x2xf32>, vector<16x2xf32> -> vector<16x2xf32>
    %31 = vector.shape_cast %30 : vector<16x2xf32> to vector<1x16x2xf32>
    %32 = arith.truncf %31 : vector<1x16x2xf32> to vector<1x16x2xbf16>
    "tpu.trace_start"() <{level = 10 : i32, message = "bmn,bng->bmg"}> : () -> ()
    %cst_13 = arith.constant dense<0.000000e+00> : vector<1x16x2xf32>
    %33 = tpu.matmul %7, %32, %cst_13 {dimension_numbers = #tpu.dot_dimension_numbers<[2], [1], [1], [2], [0, 0, 0, 1, 1, 2], [0], [0]>} : vector<1x16x16xbf16>, vector<1x16x2xbf16>, vector<1x16x2xf32> -> vector<1x16x2xf32>
    "tpu.trace_stop"() : () -> ()
    %34 = vector.shape_cast %6 : vector<1x2xf32> to vector<1x1x2xf32>
    %35 = vector.broadcast %34 : vector<1x1x2xf32> to vector<1x16x2xf32>
    %36 = arith.addf %33, %35 : vector<1x16x2xf32>
    %c0_14 = arith.constant 0 : index
    %c0_15 = arith.constant 0 : index
    %c0_16 = arith.constant 0 : index
    %37 = vector.load %arg4[%c0_14, %c0_15, %c0_16] : memref<1x16x2xf32, #tpu.memory_space<vmem>>, vector<1x16x2xf32>
    tpu.vector_store %arg4[%c0_14, %c0_15, %c0_16], %36 {strides = array<i32>} : memref<1x16x2xf32, #tpu.memory_space<vmem>>, vector<1x16x2xf32>,
    return
  }
  func.func @transform_0(%arg0: i32) -> (i32, i32) {
    %c0_i32 = arith.constant 0 : i32
    %c0_i32_0 = arith.constant 0 : i32
    %c0_i32_1 = arith.constant 0 : i32
    return %c0_i32, %c0_i32_0 : i32, i32
  }
  func.func @transform_1(%arg0: i32) -> (i32, i32, i32) {
    %c0_i32 = arith.constant 0 : i32
    %c0_i32_0 = arith.constant 0 : i32
    %c0_i32_1 = arith.constant 0 : i32
    return %arg0, %c0_i32, %c0_i32_0 : i32, i32, i32
  }
  func.func @transform_2(%arg0: i32) -> (i32, i32, i32) {
    %c0_i32 = arith.constant 0 : i32
    %c0_i32_0 = arith.constant 0 : i32
    %c0_i32_1 = arith.constant 0 : i32
    return %arg0, %c0_i32, %c0_i32_0 : i32, i32, i32
  }
  func.func @transform_3(%arg0: i32) -> (i32, i32, i32) {
    %c0_i32 = arith.constant 0 : i32
    %c0_i32_0 = arith.constant 0 : i32
    %c0_i32_1 = arith.constant 0 : i32
    return %arg0, %c0_i32, %c0_i32_0 : i32, i32, i32
  }
}

</mosaic_0001>

<llo_original>
// kernel: tpu_custom_call.1
$region0: #{tpu_custom_call.1}
  #allocation0 [shape = 'u32[]', space=smem, size = 0x4, offset = 0x4, fixed_abs, tag = 'smem constant byte address 0x4 - core index']
  #allocation1 [shape = 'u32[144,128]{1,0:T(1,128)}', space=vmem, size = 0x12000, scoped, tag = 'internal scratch']
  %s0 = inlined_call_operand.vmem [shape: f32[48,8], index: 0, kind: input, shape index: {}]
  %s1 = inlined_call_operand.vmem [shape: f32[2,16,2], index: 1, kind: input, shape index: {}]
  %s2 = inlined_call_operand.vmem [shape: bf16[2,16,16], index: 2, kind: input, shape index: {}]
  %s3 = inlined_call_operand.vmem [shape: f32[2,16,2], index: 3, kind: output, shape index: {}]
  %s4 = sld [smem:[#allocation0]]
  $region45: #{tpu_custom_call.1} parent=0
    _
  %s6 = ssub.s32 1, %s4
  %s7 = scalar_select 0, %s6, %s4
  loop: start=0, step=1, limit=4
  $region2: #{tpu_custom_call.1} parent=0 // loop_pre_header
    _
  $region3: #{tpu_custom_call.1} parent=0 // loop_header
    %s9 = sphi 0, %s13
    %p10 = scmp.ge.s32.totalorder %s9, 4
    %s17 = sphi 0, %s17
    %s19 = sphi 0, %s17
    %s20 = sphi 0, %s19
    %s34 = sphi 0, %s20
    %s40 = sphi 0, %s42
    %s43 = sphi 0, %s40
    %s44 = sphi 0, %s43
    %s60 = sphi 0, %s44
    %s66 = sphi 0, %s68
    %s69 = sphi 0, %s66
    %s70 = sphi 0, %s69
    %s86 = sphi 0, %s70
    %s92 = sphi 0, %s94
    %s95 = sphi 0, %s92
    %s96 = sphi 0, %s95
    %s112 = sphi 0, %s96
  $region4: #{tpu_custom_call.1} parent=0 // loop_header_branch
    %12 = sbr.rel (%p10) target = $region8
  $region5: #{tpu_custom_call.1} parent=0 // loop_body
    %s14 = ssub.s32 %s9, 1
    %s15 = ssub.s32 %s9, 2
    %s16 = sadd.s32 %s9, 1
    %s18 = sadd.s32 %s17, 1
    %p21 = scmp.eq.s32.totalorder %s9, 1
    %p22 = scmp.ne.s32.totalorder %s17, %s19
    %p23 = scmp.eq.s32.totalorder %s9, 0
    %p24 = por %p22, %p23
    %p25 = scmp.ne.s32.totalorder %s17, %s19
    %p26 = scmp.eq.s32.totalorder %s14, 1
    %p27 = por %p25, %p26
    %p28 = scmp.ne.s32.totalorder %s19, %s20
    %p29 = scmp.eq.s32.totalorder %s14, 0
    %p30 = por %p28, %p29
    %p31 = scmp.ne.s32.totalorder %s19, %s20
    %p32 = scmp.eq.s32.totalorder %s15, 1
    %p33 = por %p31, %p32
    %p35 = scmp.ne.s32.totalorder %s20, %s34
    %p36 = scmp.eq.s32.totalorder %s15, 0
    %p37 = por %p35, %p36
    %s38 = ssub.s32 %s9, %s16
    %p39 = scmp.eq.s32.totalorder %s38, 0
    %s41 = sadd.s32 %s40, 1
    %s42 = scalar_select %p39, %s40, %s41
    %p45 = pneg %p39
    %p46 = scmp.eq.s32.totalorder %s9, 1
    %p47 = por %p45, %p46
    %p48 = scmp.ne.s32.totalorder %s40, %s43
    %p49 = scmp.eq.s32.totalorder %s9, 0
    %p50 = por %p48, %p49
    %p51 = scmp.ne.s32.totalorder %s40, %s43
    %p52 = scmp.eq.s32.totalorder %s14, 1
    %p53 = por %p51, %p52
    %p54 = scmp.ne.s32.totalorder %s43, %s44
    %p55 = scmp.eq.s32.totalorder %s14, 0
    %p56 = por %p54, %p55
    %p57 = scmp.ne.s32.totalorder %s43, %s44
    %p58 = scmp.eq.s32.totalorder %s15, 1
    %p59 = por %p57, %p58
    %p61 = scmp.ne.s32.totalorder %s44, %s60
    %p62 = scmp.eq.s32.totalorder %s15, 0
    %p63 = por %p61, %p62
    %s64 = ssub.s32 %s9, %s16
    %p65 = scmp.eq.s32.totalorder %s64, 0
    %s67 = sadd.s32 %s66, 1
    %s68 = scalar_select %p65, %s66, %s67
    %p71 = pneg %p65
    %p72 = scmp.eq.s32.totalorder %s9, 1
    %p73 = por %p71, %p72
    %p74 = scmp.ne.s32.totalorder %s66, %s69
    %p75 = scmp.eq.s32.totalorder %s9, 0
    %p76 = por %p74, %p75
    %p77 = scmp.ne.s32.totalorder %s66, %s69
    %p78 = scmp.eq.s32.totalorder %s14, 1
    %p79 = por %p77, %p78
    %p80 = scmp.ne.s32.totalorder %s69, %s70
    %p81 = scmp.eq.s32.totalorder %s14, 0
    %p82 = por %p80, %p81
    %p83 = scmp.ne.s32.totalorder %s69, %s70
    %p84 = scmp.eq.s32.totalorder %s15, 1
    %p85 = por %p83, %p84
    %p87 = scmp.ne.s32.totalorder %s70, %s86
    %p88 = scmp.eq.s32.totalorder %s15, 0
    %p89 = por %p87, %p88
    %s90 = ssub.s32 %s9, %s16
    %p91 = scmp.eq.s32.totalorder %s90, 0
    %s93 = sadd.s32 %s92, 1
    %s94 = scalar_select %p91, %s92, %s93
    %p97 = pneg %p91
    %p98 = scmp.eq.s32.totalorder %s9, 1
    %p99 = por %p97, %p98
    %p100 = scmp.ne.s32.totalorder %s92, %s95
    %p101 = scmp.eq.s32.totalorder %s9, 0
    %p102 = por %p100, %p101
    %p103 = scmp.ne.s32.totalorder %s92, %s95
    %p104 = scmp.eq.s32.totalorder %s14, 1
    %p105 = por %p103, %p104
    %p106 = scmp.ne.s32.totalorder %s95, %s96
    %p107 = scmp.eq.s32.totalorder %s14, 0
    %p108 = por %p106, %p107
    %p109 = scmp.ne.s32.totalorder %s95, %s96
    %p110 = scmp.eq.s32.totalorder %s15, 1
    %p111 = por %p109, %p110
    %p113 = scmp.ne.s32.totalorder %s96, %s112
    %p114 = scmp.eq.s32.totalorder %s15, 0
    %p115 = por %p113, %p114
    %p116 = scmp.le.s32.totalorder 1, %s9
    %p117 = scmp.lt.s32.totalorder %s9, 3
    %p118 = pnand %p116, %p117
    %p119 = pneg %p118
    // Predicated region
    $region9: #{tpu_custom_call.1} parent=5 // pred_check
      _
    $region10: #{tpu_custom_call.1} parent=5 // pred_check_branch
      %121 = sbr.rel (%p118) target = $region12
    $region11: #{tpu_custom_call.1} parent=5 // pred_region
      %s122 = ssub.s32 %s9, 1
      // Predicated region
      $region13: #{tpu_custom_call.1} parent=11 // pred_check
        %p123 = pneg %p30
      $region14: #{tpu_custom_call.1} parent=11 // pred_check_branch
        %125 = sbr.rel (%p123) target = $region16
      $region15: #{tpu_custom_call.1} parent=11 // pred_region
        _
      $region16: #{tpu_custom_call.1} parent=11 // pred_fallthru
        _
    $region12: #{tpu_custom_call.1} parent=5 // pred_fallthru
      _
    %p126 = scmp.lt.s32.totalorder %s9, 2
    // Predicated region
    $region17: #{tpu_custom_call.1} parent=5 // pred_check
      %p127 = pneg %p126
    $region18: #{tpu_custom_call.1} parent=5 // pred_check_branch
      %129 = sbr.rel (%p127) target = $region20
    $region19: #{tpu_custom_call.1} parent=5 // pred_region
      // Predicated region
      $region21: #{tpu_custom_call.1} parent=19 // pred_check
        %p130 = pneg %p50
      $region22: #{tpu_custom_call.1} parent=19 // pred_check_branch
        %132 = sbr.rel (%p130) target = $region24
      $region23: #{tpu_custom_call.1} parent=19 // pred_region
        %p133 = scmp.lt.s32.totalorder %s9, 1
        %s134 = scalar_select %p133, %s9, 1
        %s135 = smul.addr %s134, 2
        %s136 = smul.addr %s135, 8
        %s137 = scalar_lea.vmem %s1, %s136
      $region24: #{tpu_custom_call.1} parent=19 // pred_fallthru
        _
      // Predicated region
      $region25: #{tpu_custom_call.1} parent=19 // pred_check
        %p138 = pneg %p76
      $region26: #{tpu_custom_call.1} parent=19 // pred_check_branch
        %140 = sbr.rel (%p138) target = $region28
      $region27: #{tpu_custom_call.1} parent=19 // pred_region
        %p141 = scmp.lt.s32.totalorder %s9, 1
        %s142 = scalar_select %p141, %s9, 1
        %s143 = smul.addr %s142, 2
        %s144 = smul.addr %s143, 4
        %s145 = scalar_lea.vmem %s2, %s144
      $region28: #{tpu_custom_call.1} parent=19 // pred_fallthru
        _
    $region20: #{tpu_custom_call.1} parent=5 // pred_fallthru
      _
    %p146 = scmp.le.s32.totalorder 1, %s9
    %p147 = scmp.lt.s32.totalorder %s9, 3
    %p148 = pnand %p146, %p147
    %p149 = pneg %p148
    // Predicated region
    $region29: #{tpu_custom_call.1} parent=5 // pred_check
      _
    $region30: #{tpu_custom_call.1} parent=5 // pred_check_branch
      %151 = sbr.rel (%p148) target = $region32
    $region31: #{tpu_custom_call.1} parent=5 // pred_region
      %s152 = ssub.s32 %s9, 1
      %p153 = pneg %p30
      %p154 = pneg %p27
      %p155 = scmp.lt.s32.totalorder %s14, 1
      %s156 = scalar_select %p155, %s14, 1
      %s157 = smul.addr %s156, 2
      %s158 = smul.addr %s157, 8
      %s159 = scalar_lea.vmem %s1, %s158
      %p160 = pneg %p56
      %p161 = pneg %p53
      %p162 = scmp.lt.s32.totalorder %s14, 1
      %s163 = scalar_select %p162, %s14, 1
      %s164 = smul.addr %s163, 2
      %s165 = smul.addr %s164, 4
      %s166 = scalar_lea.vmem %s2, %s165
      %p167 = pneg %p82
      %p168 = pneg %p79
      %p169 = pneg %p108
      %p170 = pneg %p105
      %p171 = scmp.lt.s32.totalorder %s14, 1
      %s172 = scalar_select %p171, %s14, 1
      %s173 = smul.addr %s172, 2
      %s174 = smul.addr %s173, 8
      %s175 = scalar_lea.vmem %s3, %s174
      %p176 = scmp.lt.s32.totalorder %s14, 1
      %s177 = scalar_select %p176, %s14, 1
      %s178 = smul.addr %s177, 2
      %s179 = smul.addr %s178, 8
      %s180 = scalar_lea.vmem %s1, %s179
      %p181 = scmp.lt.s32.totalorder %s14, 1
      %s182 = scalar_select %p181, %s14, 1
      %s183 = smul.addr %s182, 2
      %s184 = smul.addr %s183, 4
      %s185 = scalar_lea.vmem %s2, %s184
      %p186 = scmp.lt.s32.totalorder %s14, 1
      %s187 = scalar_select %p186, %s14, 1
      %s188 = smul.addr %s187, 2
      %s189 = smul.addr %s188, 8
      %s190 = scalar_lea.vmem %s3, %s189
      %v192 = vld [vmem:[%s0] sm:$0xff]
      %v193 = vld [vmem:[%s0 + $0x8] sm:$0xff]
      %v194 = vld [vmem:[%s0 + $0x10] sm:$0xff]
      %v195 = vld [vmem:[%s0 + $0x18] sm:$0xff]
      %v196 = vld [vmem:[%s0 + $0x20] sm:$0xff]
      %v197 = vld [vmem:[%s0 + $0x28] sm:$0xff]
      %v198 = vld [vmem:[%s185] sm:$0xf]
      %v199 = vld [vmem:[%s185 + $0x4] sm:$0xf]
      %v200 = vld [vmem:[%s180] sm:$0xff]
      %v201 = vld [vmem:[%s180 + $0x8] sm:$0xff]
      %vm202 = vcmask 15360
      %v204 = vsel %vm202, %v200, 0
      %v207 = vsel %vm202, %v201, 0
      %vm209 = vcmask 1041408
      %v211 = vsel %vm209, %v192, 0
      %213 = vmatprep.subr.mxu0 0.0
      %214 = vmatpush1.msra.mxu0 0.0
      %215 = vmatprep.subr.mxu0 0.0
      %216 = vmatpush1.msra.mxu0 0.0
      %217 = vmatprep.subr.mxu0 0.0
      %218 = vmatpush1.msra.mxu0 0.0
      %219 = vmatprep.subr.mxu0 0.0
      %220 = vmatpush1.msra.mxu0 0.0
      %221 = vmatprep.subr.mxu0 0.0
      %222 = vmatpush1.msra.mxu0 0.0
      %223 = vmatprep.subr.mxu0 0.0
      %224 = vmatpush1.msra.mxu0 0.0
      %225 = vmatprep.subr.mxu0 0.0
      %226 = vmatpush1.msra.mxu0 0.0
      %227 = vmatprep.subr.mxu0 0.0
      %228 = vmatpush1.msra.mxu0 0.0
      %229 = vmatprep.subr.mxu0 0.0
      %230 = vmatpush1.msra.mxu0 0.0
      %231 = vmatprep.subr.mxu0 0.0
      %232 = vmatpush1.msra.mxu0 0.0
      %233 = vmatprep.subr.mxu0 0.0
      %234 = vmatpush1.msra.mxu0 0.0
      %235 = vmatprep.subr.mxu0 0.0
      %236 = vmatpush1.msra.mxu0 0.0
      %237 = vmatprep.subr.mxu0 0.0
      %238 = vmatpush1.msra.mxu0 0.0
      %239 = vmatprep.subr.mxu0 0.0
      %240 = vmatpush1.msra.mxu0 0.0
      %241 = vmatprep.subr.mxu0 0.0
      %242 = vmatpush1.msra.mxu0 0.0
      %243 = vmatprep.subr.mxu0 0.0
      %244 = vmatpush1.msra.mxu0 %v211
      %245 = vmatprep.subr.mxu0 0.0
      %246 = vmatpush2.msra.mxu0 0.0
      %247 = vmatprep.subr.mxu0 0.0
      %248 = vmatpush2.msra.mxu0 0.0
      %249 = vmatprep.subr.mxu0 0.0
      %250 = vmatpush2.msra.mxu0 0.0
      %251 = vmatprep.subr.mxu0 0.0
      %252 = vmatpush2.msra.mxu0 0.0
      %253 = vmatprep.subr.mxu0 0.0
      %254 = vmatpush2.msra.mxu0 0.0
      %255 = vmatprep.subr.mxu0 0.0
      %256 = vmatpush2.msra.mxu0 0.0
      %257 = vmatprep.subr.mxu0 0.0
      %258 = vmatpush2.msra.mxu0 0.0
      %259 = vmatprep.subr.mxu0 0.0
      %260 = vmatpush2.msra.mxu0 0.0
      %261 = vmatprep.subr.mxu0 0.0
      %262 = vmatpush2.msra.mxu0 0.0
      %263 = vmatprep.subr.mxu0 0.0
      %264 = vmatpush2.msra.mxu0 0.0
      %265 = vmatprep.subr.mxu0 0.0
      %266 = vmatpush2.msra.mxu0 0.0
      %267 = vmatprep.subr.mxu0 0.0
      %268 = vmatpush2.msra.mxu0 0.0
      %269 = vmatprep.subr.mxu0 0.0
      %270 = vmatpush2.msra.mxu0 0.0
      %271 = vmatprep.subr.mxu0 0.0
      %272 = vmatpush2.msra.mxu0 0.0
      %273 = vmatprep.subr.mxu0 0.0
      %274 = vmatpush2.msra.mxu0 0.0
      %275 = vmatprep.subr.mxu0 0.0
      %276 = vmatpush2.msra.mxu0 0.0
      %277 = vmatprep.mubr.f32.mxu0 0.0
      %278 = vmatmul.mubr.f32.gmra.mxu0 %v204
      %v279 = vpop.f32.mrf.mxu0
      %v280 = vadd.f32 0.0, %v279
      %v281 = vpop.f32.mrf.mxu0
      %282 = vmatprep.mubr.f32.mxu0 0.0
      %283 = vmatmul.mubr.f32.gmra.mxu0 %v207
      %v284 = vpop.f32.mrf.mxu0
      %v285 = vadd.f32 0.0, %v284
      %v286 = vpop.f32.mrf.mxu0
      %287 = vdwg.mxu0
      %v288 = vpack.c.bf16 %v285, %v280
      %v289 = vlaneseq
      %v290 = vshrl.u32 %v289, 7
      %v291 = vsub.s32 0, %v290
      %v292 = vrot.slane %v193, %v291
      %v295 = vunpack.c.l.b16 %v198
      %v296 = vunpack.c.l.b16 %v199
      %v297 = vpack.c.b16 %v296, %v295
      %vm298 = vcmask 130048
      %v300 = vsel %vm298, %v297, 0
      %302 = vmatprep.subr.bf16.mxu0 0
      %303 = vmatpush1.bf16.msra.mxu0 0
      %304 = vmatprep.subr.bf16.mxu0 0
      %305 = vmatpush1.bf16.msra.mxu0 0
      %306 = vmatprep.subr.bf16.mxu0 0
      %307 = vmatpush1.bf16.msra.mxu0 0
      %308 = vmatprep.subr.bf16.mxu0 0
      %309 = vmatpush1.bf16.msra.mxu0 0
      %310 = vmatprep.subr.bf16.mxu0 0
      %311 = vmatpush1.bf16.msra.mxu0 0
      %312 = vmatprep.subr.bf16.mxu0 0
      %313 = vmatpush1.bf16.msra.mxu0 0
      %314 = vmatprep.subr.bf16.mxu0 0
      %315 = vmatpush1.bf16.msra.mxu0 0
      %316 = vmatprep.subr.bf16.mxu0 0
      %317 = vmatpush1.bf16.msra.mxu0 %v288
      %318 = vmatprep.subr.bf16.mxu0 0
      %319 = vmatpush2.bf16.msra.mxu0 0
      %320 = vmatprep.subr.bf16.mxu0 0
      %321 = vmatpush2.bf16.msra.mxu0 0
      %322 = vmatprep.subr.bf16.mxu0 0
      %323 = vmatpush2.bf16.msra.mxu0 0
      %324 = vmatprep.subr.bf16.mxu0 0
      %325 = vmatpush2.bf16.msra.mxu0 0
      %326 = vmatprep.subr.bf16.mxu0 0
      %327 = vmatpush2.bf16.msra.mxu0 0
      %328 = vmatprep.subr.bf16.mxu0 0
      %329 = vmatpush2.bf16.msra.mxu0 0
      %330 = vmatprep.subr.bf16.mxu0 0
      %331 = vmatpush2.bf16.msra.mxu0 0
      %332 = vmatprep.subr.bf16.mxu0 0
      %333 = vmatpush2.bf16.msra.mxu0 0
      %334 = vmatprep.mubr.bf16.mxu0 0
      %335 = vmatmul.mubr.bf16.gmra.mxu0 %v300
      %v336 = vpop.f32.mrf.mxu0
      %v337 = vadd.f32 %v292, %v336
      %v338 = vpop.f32.mrf.mxu0
      %v339 = vpop.f32.mrf.mxu0
      %v340 = vadd.f32 %v292, %v339
      %v341 = vpop.f32.mrf.mxu0
      %342 = vdwg.mxu0
      %v343 = vmax.f32 %v337, 0.0
      %v344 = vmax.f32 %v340, 0.0
      %vm345 = vcmask 39936
      %v347 = vsel %vm345, %v343, 0
      %v350 = vsel %vm345, %v344, 0
      %vm352 = vcmask 1044480
      %v354 = vsel %vm352, %v194, 0
      %356 = vmatprep.subr.mxu0 0.0
      %357 = vmatpush1.msra.mxu0 0.0
      %358 = vmatprep.subr.mxu0 0.0
      %359 = vmatpush1.msra.mxu0 0.0
      %360 = vmatprep.subr.mxu0 0.0
      %361 = vmatpush1.msra.mxu0 0.0
      %362 = vmatprep.subr.mxu0 0.0
      %363 = vmatpush1.msra.mxu0 0.0
      %364 = vmatprep.subr.mxu0 0.0
      %365 = vmatpush1.msra.mxu0 0.0
      %366 = vmatprep.subr.mxu0 0.0
      %367 = vmatpush1.msra.mxu0 0.0
      %368 = vmatprep.subr.mxu0 0.0
      %369 = vmatpush1.msra.mxu0 0.0
      %370 = vmatprep.subr.mxu0 0.0
      %371 = vmatpush1.msra.mxu0 0.0
      %372 = vmatprep.subr.mxu0 0.0
      %373 = vmatpush1.msra.mxu0 0.0
      %374 = vmatprep.subr.mxu0 0.0
      %375 = vmatpush1.msra.mxu0 0.0
      %376 = vmatprep.subr.mxu0 0.0
      %377 = vmatpush1.msra.mxu0 0.0
      %378 = vmatprep.subr.mxu0 0.0
      %379 = vmatpush1.msra.mxu0 0.0
      %380 = vmatprep.subr.mxu0 0.0
      %381 = vmatpush1.msra.mxu0 0.0
      %382 = vmatprep.subr.mxu0 0.0
      %383 = vmatpush1.msra.mxu0 0.0
      %384 = vmatprep.subr.mxu0 0.0
      %385 = vmatpush1.msra.mxu0 0.0
      %386 = vmatprep.subr.mxu0 0.0
      %387 = vmatpush1.msra.mxu0 %v354
      %388 = vmatprep.subr.mxu0 0.0
      %389 = vmatpush2.msra.mxu0 0.0
      %390 = vmatprep.subr.mxu0 0.0
      %391 = vmatpush2.msra.mxu0 0.0
      %392 = vmatprep.subr.mxu0 0.0
      %393 = vmatpush2.msra.mxu0 0.0
      %394 = vmatprep.subr.mxu0 0.0
      %395 = vmatpush2.msra.mxu0 0.0
      %396 = vmatprep.subr.mxu0 0.0
      %397 = vmatpush2.msra.mxu0 0.0
      %398 = vmatprep.subr.mxu0 0.0
      %399 = vmatpush2.msra.mxu0 0.0
      %400 = vmatprep.subr.mxu0 0.0
      %401 = vmatpush2.msra.mxu0 0.0
      %402 = vmatprep.subr.mxu0 0.0
      %403 = vmatpush2.msra.mxu0 0.0
      %404 = vmatprep.subr.mxu0 0.0
      %405 = vmatpush2.msra.mxu0 0.0
      %406 = vmatprep.subr.mxu0 0.0
      %407 = vmatpush2.msra.mxu0 0.0
      %408 = vmatprep.subr.mxu0 0.0
      %409 = vmatpush2.msra.mxu0 0.0
      %410 = vmatprep.subr.mxu0 0.0
      %411 = vmatpush2.msra.mxu0 0.0
      %412 = vmatprep.subr.mxu0 0.0
      %413 = vmatpush2.msra.mxu0 0.0
      %414 = vmatprep.subr.mxu0 0.0
      %415 = vmatpush2.msra.mxu0 0.0
      %416 = vmatprep.subr.mxu0 0.0
      %417 = vmatpush2.msra.mxu0 0.0
      %418 = vmatprep.subr.mxu0 0.0
      %419 = vmatpush2.msra.mxu0 0.0
      %420 = vmatprep.mubr.f32.mxu0 0.0
      %421 = vmatmul.mubr.f32.gmra.mxu0 %v347
      %v422 = vpop.f32.mrf.mxu0
      %v423 = vadd.f32 0.0, %v422
      %v424 = vpop.f32.mrf.mxu0
      %425 = vmatprep.mubr.f32.mxu0 0.0
      %426 = vmatmul.mubr.f32.gmra.mxu0 %v350
      %v427 = vpop.f32.mrf.mxu0
      %v428 = vadd.f32 0.0, %v427
      %v429 = vpop.f32.mrf.mxu0
      %430 = vdwg.mxu0
      %v431 = vpack.c.bf16 %v428, %v423
      %v432 = vlaneseq
      %v433 = vshrl.u32 %v432, 7
      %v434 = vsub.s32 0, %v433
      %v435 = vrot.slane %v195, %v434
      %436 = vmatprep.subr.bf16.mxu0 0
      %437 = vmatpush1.bf16.msra.mxu0 0
      %438 = vmatprep.subr.bf16.mxu0 0
      %439 = vmatpush1.bf16.msra.mxu0 0
      %440 = vmatprep.subr.bf16.mxu0 0
      %441 = vmatpush1.bf16.msra.mxu0 0
      %442 = vmatprep.subr.bf16.mxu0 0
      %443 = vmatpush1.bf16.msra.mxu0 0
      %444 = vmatprep.subr.bf16.mxu0 0
      %445 = vmatpush1.bf16.msra.mxu0 0
      %446 = vmatprep.subr.bf16.mxu0 0
      %447 = vmatpush1.bf16.msra.mxu0 0
      %448 = vmatprep.subr.bf16.mxu0 0
      %449 = vmatpush1.bf16.msra.mxu0 0
      %450 = vmatprep.subr.bf16.mxu0 0
      %451 = vmatpush1.bf16.msra.mxu0 %v431
      %452 = vmatprep.subr.bf16.mxu0 0
      %453 = vmatpush2.bf16.msra.mxu0 0
      %454 = vmatprep.subr.bf16.mxu0 0
      %455 = vmatpush2.bf16.msra.mxu0 0
      %456 = vmatprep.subr.bf16.mxu0 0
      %457 = vmatpush2.bf16.msra.mxu0 0
      %458 = vmatprep.subr.bf16.mxu0 0
      %459 = vmatpush2.bf16.msra.mxu0 0
      %460 = vmatprep.subr.bf16.mxu0 0
      %461 = vmatpush2.bf16.msra.mxu0 0
      %462 = vmatprep.subr.bf16.mxu0 0
      %463 = vmatpush2.bf16.msra.mxu0 0
      %464 = vmatprep.subr.bf16.mxu0 0
      %465 = vmatpush2.bf16.msra.mxu0 0
      %466 = vmatprep.subr.bf16.mxu0 0
      %467 = vmatpush2.bf16.msra.mxu0 0
      %468 = vmatprep.mubr.bf16.mxu0 0
      %469 = vmatmul.mubr.bf16.gmra.mxu0 %v300
      %v470 = vpop.f32.mrf.mxu0
      %v471 = vadd.f32 %v435, %v470
      %v472 = vpop.f32.mrf.mxu0
      %v473 = vpop.f32.mrf.mxu0
      %v474 = vadd.f32 %v435, %v473
      %v475 = vpop.f32.mrf.mxu0
      %476 = vdwg.mxu0
      %v477 = vmax.f32 %v471, 0.0
      %v478 = vmax.f32 %v474, 0.0
      %v480 = vsel %vm345, %v477, 0
      %v483 = vsel %vm345, %v478, 0
      %v486 = vsel %vm352, %v196, 0
      %488 = vmatprep.subr.mxu0 0.0
      %489 = vmatpush1.msra.mxu0 0.0
      %490 = vmatprep.subr.mxu0 0.0
      %491 = vmatpush1.msra.mxu0 0.0
      %492 = vmatprep.subr.mxu0 0.0
      %493 = vmatpush1.msra.mxu0 0.0
      %494 = vmatprep.subr.mxu0 0.0
      %495 = vmatpush1.msra.mxu0 0.0
      %496 = vmatprep.subr.mxu0 0.0
      %497 = vmatpush1.msra.mxu0 0.0
      %498 = vmatprep.subr.mxu0 0.0
      %499 = vmatpush1.msra.mxu0 0.0
      %500 = vmatprep.subr.mxu0 0.0
      %501 = vmatpush1.msra.mxu0 0.0
      %502 = vmatprep.subr.mxu0 0.0
      %503 = vmatpush1.msra.mxu0 0.0
      %504 = vmatprep.subr.mxu0 0.0
      %505 = vmatpush1.msra.mxu0 0.0
      %506 = vmatprep.subr.mxu0 0.0
      %507 = vmatpush1.msra.mxu0 0.0
      %508 = vmatprep.subr.mxu0 0.0
      %509 = vmatpush1.msra.mxu0 0.0
      %510 = vmatprep.subr.mxu0 0.0
      %511 = vmatpush1.msra.mxu0 0.0
      %512 = vmatprep.subr.mxu0 0.0
      %513 = vmatpush1.msra.mxu0 0.0
      %514 = vmatprep.subr.mxu0 0.0
      %515 = vmatpush1.msra.mxu0 0.0
      %516 = vmatprep.subr.mxu0 0.0
      %517 = vmatpush1.msra.mxu0 0.0
      %518 = vmatprep.subr.mxu0 0.0
      %519 = vmatpush1.msra.mxu0 %v486
      %520 = vmatprep.subr.mxu0 0.0
      %521 = vmatpush2.msra.mxu0 0.0
      %522 = vmatprep.subr.mxu0 0.0
      %523 = vmatpush2.msra.mxu0 0.0
      %524 = vmatprep.subr.mxu0 0.0
      %525 = vmatpush2.msra.mxu0 0.0
      %526 = vmatprep.subr.mxu0 0.0
      %527 = vmatpush2.msra.mxu0 0.0
      %528 = vmatprep.subr.mxu0 0.0
      %529 = vmatpush2.msra.mxu0 0.0
      %530 = vmatprep.subr.mxu0 0.0
      %531 = vmatpush2.msra.mxu0 0.0
      %532 = vmatprep.subr.mxu0 0.0
      %533 = vmatpush2.msra.mxu0 0.0
      %534 = vmatprep.subr.mxu0 0.0
      %535 = vmatpush2.msra.mxu0 0.0
      %536 = vmatprep.subr.mxu0 0.0
      %537 = vmatpush2.msra.mxu0 0.0
      %538 = vmatprep.subr.mxu0 0.0
      %539 = vmatpush2.msra.mxu0 0.0
      %540 = vmatprep.subr.mxu0 0.0
      %541 = vmatpush2.msra.mxu0 0.0
      %542 = vmatprep.subr.mxu0 0.0
      %543 = vmatpush2.msra.mxu0 0.0
      %544 = vmatprep.subr.mxu0 0.0
      %545 = vmatpush2.msra.mxu0 0.0
      %546 = vmatprep.subr.mxu0 0.0
      %547 = vmatpush2.msra.mxu0 0.0
      %548 = vmatprep.subr.mxu0 0.0
      %549 = vmatpush2.msra.mxu0 0.0
      %550 = vmatprep.subr.mxu0 0.0
      %551 = vmatpush2.msra.mxu0 0.0
      %552 = vmatprep.mubr.f32.mxu0 0.0
      %553 = vmatmul.mubr.f32.gmra.mxu0 %v480
      %v554 = vpop.f32.mrf.mxu0
      %v555 = vadd.f32 0.0, %v554
      %v556 = vpop.f32.mrf.mxu0
      %557 = vmatprep.mubr.f32.mxu0 0.0
      %558 = vmatmul.mubr.f32.gmra.mxu0 %v483
      %v559 = vpop.f32.mrf.mxu0
      %v560 = vadd.f32 0.0, %v559
      %v561 = vpop.f32.mrf.mxu0
      %562 = vdwg.mxu0
      %v563 = vpack.c.bf16 %v560, %v555
      %v564 = vlaneseq
      %v565 = vshrl.u32 %v564, 7
      %v566 = vsub.s32 0, %v565
      %v567 = vrot.slane %v197, %v566
      %568 = vmatprep.subr.bf16.mxu0 0
      %569 = vmatpush1.bf16.msra.mxu0 0
      %570 = vmatprep.subr.bf16.mxu0 0
      %571 = vmatpush1.bf16.msra.mxu0 0
      %572 = vmatprep.subr.bf16.mxu0 0
      %573 = vmatpush1.bf16.msra.mxu0 0
      %574 = vmatprep.subr.bf16.mxu0 0
      %575 = vmatpush1.bf16.msra.mxu0 0
      %576 = vmatprep.subr.bf16.mxu0 0
      %577 = vmatpush1.bf16.msra.mxu0 0
      %578 = vmatprep.subr.bf16.mxu0 0
      %579 = vmatpush1.bf16.msra.mxu0 0
      %580 = vmatprep.subr.bf16.mxu0 0
      %581 = vmatpush1.bf16.msra.mxu0 0
      %582 = vmatprep.subr.bf16.mxu0 0
      %583 = vmatpush1.bf16.msra.mxu0 %v563
      %584 = vmatprep.subr.bf16.mxu0 0
      %585 = vmatpush2.bf16.msra.mxu0 0
      %586 = vmatprep.subr.bf16.mxu0 0
      %587 = vmatpush2.bf16.msra.mxu0 0
      %588 = vmatprep.subr.bf16.mxu0 0
      %589 = vmatpush2.bf16.msra.mxu0 0
      %590 = vmatprep.subr.bf16.mxu0 0
      %591 = vmatpush2.bf16.msra.mxu0 0
      %592 = vmatprep.subr.bf16.mxu0 0
      %593 = vmatpush2.bf16.msra.mxu0 0
      %594 = vmatprep.subr.bf16.mxu0 0
      %595 = vmatpush2.bf16.msra.mxu0 0
      %596 = vmatprep.subr.bf16.mxu0 0
      %597 = vmatpush2.bf16.msra.mxu0 0
      %598 = vmatprep.subr.bf16.mxu0 0
      %599 = vmatpush2.bf16.msra.mxu0 0
      %600 = vmatprep.mubr.bf16.mxu0 0
      %601 = vmatmul.mubr.bf16.gmra.mxu0 %v300
      %v602 = vpop.f32.mrf.mxu0
      %v603 = vadd.f32 %v567, %v602
      %v604 = vpop.f32.mrf.mxu0
      %v605 = vpop.f32.mrf.mxu0
      %v606 = vadd.f32 %v567, %v605
      %v607 = vpop.f32.mrf.mxu0
      %608 = vdwg.mxu0
      %609 = vst.msk [vmem:[%s190] sm:$0xff] %vm202, %v603
      %610 = vst.msk [vmem:[%s190 + $0x8] sm:$0xff] %vm202, %v606
      %p611 = scmp.lt.s32.totalorder %s14, 1
      %s612 = scalar_select %p611, %s14, 1
      %s613 = smul.addr %s612, 2
      %s614 = smul.addr %s613, 8
      %s615 = scalar_lea.vmem %s3, %s614
      // Predicated region
      $region33: #{tpu_custom_call.1} parent=31 // pred_check
        %p616 = pneg %p105
      $region34: #{tpu_custom_call.1} parent=31 // pred_check_branch
        %618 = sbr.rel (%p616) target = $region36
      $region35: #{tpu_custom_call.1} parent=31 // pred_region
        _
      $region36: #{tpu_custom_call.1} parent=31 // pred_fallthru
        _
    $region32: #{tpu_custom_call.1} parent=5 // pred_fallthru
      _
    %p619 = scmp.le.s32.totalorder 2, %s9
    // Predicated region
    $region37: #{tpu_custom_call.1} parent=5 // pred_check
      %p620 = pneg %p619
    $region38: #{tpu_custom_call.1} parent=5 // pred_check_branch
      %622 = sbr.rel (%p620) target = $region40
    $region39: #{tpu_custom_call.1} parent=5 // pred_region
      %s623 = ssub.s32 %s9, 2
      // Predicated region
      $region41: #{tpu_custom_call.1} parent=39 // pred_check
        %p624 = pneg %p111
      $region42: #{tpu_custom_call.1} parent=39 // pred_check_branch
        %626 = sbr.rel (%p624) target = $region44
      $region43: #{tpu_custom_call.1} parent=39 // pred_region
        %p627 = scmp.lt.s32.totalorder %s15, 1
        %s628 = scalar_select %p627, %s15, 1
        %s629 = smul.addr %s628, 2
        %s630 = smul.addr %s629, 8
        %s631 = scalar_lea.vmem %s3, %s630
      $region44: #{tpu_custom_call.1} parent=39 // pred_fallthru
        _
    $region40: #{tpu_custom_call.1} parent=5 // pred_fallthru
      _
  $region6: #{tpu_custom_call.1} parent=0 // loop_footer
    %s13 = sadd.s32 1, %s9
  $region7: #{tpu_custom_call.1} parent=0 // loop_footer_branch
    %8 = sbr.rel target = $region3
  $region8: #{tpu_custom_call.1} parent=0 // loop_exit
    _

</llo_original>
